<compile_context>
chip_gen: v7x
topology: tpu7x:2x2x1
jax: 0.10.0
libtpu: 0.0.40
codegen_flags: <defaults>
</compile_context>

<pallas_src>
import functools

import jax
import jax.numpy as jnp
from jax.experimental import pallas as pl
from jax.experimental.pallas import tpu as pltpu

HIDDEN = 64
MLP_W = 2 * HIDDEN  # 128: fused actor|critic width (MXU/lane friendly)


def _round_up(x, m):
    return ((x + m - 1) // m) * m


def _out_width(action_dim):
    # Compact result lanes: [log_probs (A) | value | entropy], lane-padded.
    return max(8, pl.next_power_of_2(action_dim + 2))


def _actor_critic_kernel(obs_ref, w1_ref, w2_ref, w3_ref, bias_ref, out_ref, *,
                         action_dim, out_width):
    A = action_dim
    obs = obs_ref[...]                                    # (TB, obs_dim)

    b1 = bias_ref[0:1, :]                                 # (1, 128)
    b2 = bias_ref[1:2, :]
    b3 = bias_ref[2:3, :]

    # Fused actor|critic MLP: 3 matmuls with 128-wide MXU operands.
    h1 = jnp.tanh(jnp.dot(obs, w1_ref[...],
                          preferred_element_type=jnp.float32) + b1)    # (TB, 128)
    h2 = jnp.tanh(jnp.dot(h1, w2_ref[...],
                          preferred_element_type=jnp.float32) + b2)    # (TB, 128)
    out3 = jnp.dot(h2, w3_ref[...],
                   preferred_element_type=jnp.float32) + b3            # (TB, 128)

    logits = out3[:, :A]                                  # actor logits (TB, A)
    value = out3[:, A:A + 1]                              # critic value (TB, 1)

    # Stable log_softmax; entropy without materializing probs:
    #   ent = -sum(p * logp) = log(denom) - sum(e*z) / denom
    m = jnp.max(logits, axis=-1, keepdims=True)
    z = logits - m
    e = jnp.exp(z)
    denom = jnp.sum(e, axis=-1, keepdims=True)
    log_denom = jnp.log(denom)
    inv = pl.reciprocal(denom, approx=False)              # exact (1e-5 tol)
    logp_all = z - log_denom                              # (TB, A)
    ent = log_denom - jnp.sum(e * z, axis=-1, keepdims=True) * inv     # (TB, 1)

    # Compact store: [logp_all | value | ent | zero pad] -> (TB, out_width).
    pieces = [logp_all, value, ent]
    pad_w = out_width - (A + 2)
    if pad_w > 0:
        pieces.append(jnp.zeros((obs.shape[0], pad_w), jnp.float32))
    out_ref[...] = jnp.concatenate(pieces, axis=-1)


def pack_params(params):
    """Fuse the 6 PyTorch-style Linear layers into 3 matmul weights + bias tile."""
    H = HIDDEN
    A = params["aw3"].shape[1]
    assert A + 1 <= MLP_W, "action_dim too large for the fused layer-3 width"

    w1 = jnp.concatenate([params["aw1"], params["cw1"]], axis=1)       # (obs, 128)
    b1 = jnp.concatenate([params["ab1"], params["cb1"]], axis=1)       # (1, 128)

    w2 = jnp.zeros((2 * H, 2 * H), jnp.float32)
    w2 = w2.at[:H, :H].set(params["aw2"]).at[H:, H:].set(params["cw2"])
    b2 = jnp.concatenate([params["ab2"], params["cb2"]], axis=1)

    w3 = jnp.zeros((2 * H, MLP_W), jnp.float32)
    w3 = w3.at[:H, :A].set(params["aw3"]).at[H:, A:A + 1].set(params["cw3"])
    b3 = jnp.zeros((1, MLP_W), jnp.float32)
    b3 = b3.at[:, :A].set(params["ab3"]).at[:, A:A + 1].set(params["cb3"])

    bias = jnp.zeros((8, MLP_W), jnp.float32)              # one (8,128) vreg tile
    bias = bias.at[0:1, :].set(b1).at[1:2, :].set(b2).at[2:3, :].set(b3)
    return dict(w1=w1, w2=w2, w3=w3, bias=bias, action_dim=A)


def _pick_batch_tile(B, max_tile=1024):
    """Sublane-aligned batch tile; >=4 grid steps for non-tiny batches so the
    'parallel' batch axis shards across TensorCores and still pipelines."""
    b8 = _round_up(B, 8)
    if b8 <= 64:
        return b8                       # tiny rollout batch: single grid step
    return max(8, min(max_tile, _round_up(pl.cdiv(b8, 4), 8)))


def _run_kernel(packed, obs, *, max_batch_tile=1024):
    obs = obs.astype(jnp.float32)
    B, obs_dim = obs.shape
    A = packed["action_dim"]
    C = _out_width(A)

    tb = _pick_batch_tile(B, max_batch_tile)
    B_pad = pl.cdiv(B, tb) * tb
    if B_pad != B:
        # Only pad when the tile doesn't divide B (power-of-2 PPO batches skip this).
        obs = jnp.pad(obs, ((0, B_pad - B), (0, 0)))

    flops = 2 * B_pad * (obs_dim * MLP_W + 2 * MLP_W * MLP_W)
    transcendentals = B_pad * (2 * MLP_W + A + 2)          # tanh + exp + log
    bytes_accessed = 4 * (B_pad * (obs_dim + C)
                          + obs_dim * MLP_W + 2 * MLP_W * MLP_W + 8 * MLP_W)

    kernel = functools.partial(_actor_critic_kernel, action_dim=A, out_width=C)
    out = pl.pallas_call(
        kernel,
        out_shape=jax.ShapeDtypeStruct((B_pad, C), jnp.float32),
        grid_spec=pltpu.PrefetchScalarGridSpec(
            num_scalar_prefetch=0,
            grid=(B_pad // tb,),
            in_specs=[
                pl.BlockSpec((tb, obs_dim), lambda i: (i, 0)),        # obs tile
                pl.BlockSpec((obs_dim, MLP_W), lambda i: (0, 0)),     # w1 (resident)
                pl.BlockSpec((MLP_W, MLP_W), lambda i: (0, 0)),       # w2 (resident)
                pl.BlockSpec((MLP_W, MLP_W), lambda i: (0, 0)),       # w3 (resident)
                pl.BlockSpec((8, MLP_W), lambda i: (0, 0)),           # bias tile
            ],
            out_specs=pl.BlockSpec((tb, C), lambda i: (i, 0)),
        ),
        compiler_params=pltpu.CompilerParams(
            dimension_semantics=("parallel",)),
        cost_estimate=pl.CostEstimate(
            flops=flops,
            transcendentals=transcendentals,
            bytes_accessed=bytes_accessed),
    )(obs, packed["w1"], packed["w2"], packed["w3"], packed["bias"])

    out = out[:B]
    logp_all = out[:, :A]                                  # (B, A)
    value = out[:, A:A + 1]                                # (B, 1)
    ent = out[:, A + 1]                                    # (B,)
    return logp_all, value, ent


def evaluate(packed, obs, act):
    """Matches ActorCritic.evaluate: (action_logprobs, state_values, dist_entropy)."""
    logp_all, value, ent = _run_kernel(packed, obs)
    act2d = act.astype(jnp.int32).reshape(-1, 1)
    logp = jnp.take_along_axis(logp_all, act2d, axis=-1)[:, 0]
    return logp, value, ent


def act(packed, obs, key):
    """Matches ActorCritic.act: (action, action_logprob). Sampling is JAX glue."""
    logp_all, _, _ = _run_kernel(packed, obs)
    action = jax.random.categorical(key, logp_all, axis=-1)
    action_logprob = jnp.take_along_axis(logp_all, action[:, None], axis=-1)[:, 0]
    return action, action_logprob


def init_params(key, obs_dim, action_dim):
    """PyTorch-Linear-style init: U(-1/sqrt(fan_in), 1/sqrt(fan_in)); W stored (in, out)."""
    def lin(k, fan_in, fan_out):
        kw, kb = jax.random.split(k)
        bound = 1.0 / float(fan_in) ** 0.5
        w = jax.random.uniform(kw, (fan_in, fan_out), jnp.float32, -bound, bound)
        b = jax.random.uniform(kb, (1, fan_out), jnp.float32, -bound, bound)
        return w, b

    keys = jax.random.split(key, 6)
    aw1, ab1 = lin(keys[0], obs_dim, HIDDEN)
    aw2, ab2 = lin(keys[1], HIDDEN, HIDDEN)
    aw3, ab3 = lin(keys[2], HIDDEN, action_dim)
    cw1, cb1 = lin(keys[3], obs_dim, HIDDEN)
    cw2, cb2 = lin(keys[4], HIDDEN, HIDDEN)
    cw3, cb3 = lin(keys[5], HIDDEN, 1)
    return dict(aw1=aw1, ab1=ab1, aw2=aw2, ab2=ab2, aw3=aw3, ab3=ab3,
                cw1=cw1, cb1=cb1, cw2=cw2, cb2=cb2, cw3=cw3, cb3=cb3)


def _reference(params, obs):
    def mlp(x, w1, b1, w2, b2, w3, b3):
        h = jnp.tanh(x @ w1 + b1)
        h = jnp.tanh(h @ w2 + b2)
        return h @ w3 + b3

    logits = mlp(obs, params["aw1"], params["ab1"], params["aw2"],
                 params["ab2"], params["aw3"], params["ab3"])
    logp_all = jax.nn.log_softmax(logits, axis=-1)
    value = mlp(obs, params["cw1"], params["cb1"], params["cw2"],
                params["cb2"], params["cw3"], params["cb3"])
    ent = -jnp.sum(jnp.exp(logp_all) * logp_all, axis=-1)
    return logp_all, value, ent


if __name__ == "__main__":
    OBS_DIM, ACTION_DIM = 32, 8

    root = jax.random.PRNGKey(0)
    k_params, k_obs, k_act, k_sample, k_obs2 = jax.random.split(root, 5)

    params = init_params(k_params, OBS_DIM, ACTION_DIM)
    packed = pack_params(params)

    # --- small batch (single grid step, no padding) ---
    B = 8
    obs = jax.random.normal(k_obs, (B, OBS_DIM), jnp.float32)
    actions = jax.random.randint(k_act, (B,), 0, ACTION_DIM, dtype=jnp.int32)

    action_logprobs, state_values, dist_entropy = evaluate(packed, obs, actions)
    sampled_action, sampled_logprob = act(packed, obs, k_sample)
    jax.block_until_ready((action_logprobs, state_values, dist_entropy,
                           sampled_action, sampled_logprob))

    logp_all_ref, val_ref, ent_ref = _reference(params, obs)
    logp_ref = logp_all_ref[jnp.arange(B), actions]
    assert jnp.allclose(action_logprobs, logp_ref, atol=1e-5)
    assert jnp.allclose(state_values, val_ref, atol=1e-5)
    assert jnp.allclose(dist_entropy, ent_ref, atol=1e-5)
    assert bool(jnp.all((sampled_action >= 0) & (sampled_action < ACTION_DIM)))
    samp_ref = jnp.take_along_axis(logp_all_ref, sampled_action[:, None], axis=-1)[:, 0]
    assert jnp.allclose(sampled_logprob, samp_ref, atol=1e-5)

    # --- non-divisible batch (multi-step grid + tail padding path) ---
    B2 = 200
    obs2 = jax.random.normal(k_obs2, (B2, OBS_DIM), jnp.float32)
    actions2 = jnp.arange(B2, dtype=jnp.int32) % ACTION_DIM
    lp2, v2, e2 = evaluate(packed, obs2, actions2)
    jax.block_until_ready((lp2, v2, e2))

    logp_all_ref2, val_ref2, ent_ref2 = _reference(params, obs2)
    logp_ref2 = logp_all_ref2[jnp.arange(B2), actions2]
    assert jnp.allclose(lp2, logp_ref2, atol=1e-5)
    assert jnp.allclose(v2, val_ref2, atol=1e-5)
    assert jnp.allclose(e2, ent_ref2, atol=1e-5)

    print("KERNEL_OK")
</pallas_src>

<mosaic_0001>
module attributes {stable_mosaic.version = 11 : i64} {
  func.func @_actor_critic_kernel(%arg0: i32, %arg1: memref<8x32xf32, #tpu.memory_space<vmem>>, %arg2: memref<32x128xf32, #tpu.memory_space<vmem>>, %arg3: memref<128x128xf32, #tpu.memory_space<vmem>>, %arg4: memref<128x128xf32, #tpu.memory_space<vmem>>, %arg5: memref<8x128xf32, #tpu.memory_space<vmem>>, %arg6: memref<8x16xf32, #tpu.memory_space<vmem>>) attributes {dimension_semantics = [#tpu.dimension_semantics<parallel>], iteration_bounds = array<i64: 1>, scalar_prefetch = 0 : i64, scratch_operands = 0 : i64, tpu.core_type = #tpu.core_type<tc>, window_params = [{transform_indices = @transform_0, window_bounds = array<i64: 8, 32>}, {pipeline_mode = #tpu.pipeline_mode<synchronous>, transform_indices = @transform_1, window_bounds = array<i64: 32, 128>}, {pipeline_mode = #tpu.pipeline_mode<synchronous>, transform_indices = @transform_2, window_bounds = array<i64: 128, 128>}, {pipeline_mode = #tpu.pipeline_mode<synchronous>, transform_indices = @transform_3, window_bounds = array<i64: 128, 128>}, {pipeline_mode = #tpu.pipeline_mode<synchronous>, transform_indices = @transform_4, window_bounds = array<i64: 8, 128>}, {transform_indices = @transform_5, window_bounds = array<i64: 8, 16>}]} {
    %c0 = arith.constant 0 : index
    %c0_0 = arith.constant 0 : index
    %0 = vector.load %arg1[%c0, %c0_0] : memref<8x32xf32, #tpu.memory_space<vmem>>, vector<8x32xf32>
    %c0_1 = arith.constant 0 : index
    %c0_2 = arith.constant 0 : index
    %1 = vector.load %arg5[%c0_1, %c0_2] : memref<8x128xf32, #tpu.memory_space<vmem>>, vector<1x128xf32>
    %c1 = arith.constant 1 : index
    %c0_3 = arith.constant 0 : index
    %2 = vector.load %arg5[%c1, %c0_3] : memref<8x128xf32, #tpu.memory_space<vmem>>, vector<1x128xf32>
    %c2 = arith.constant 2 : index
    %c0_4 = arith.constant 0 : index
    %3 = vector.load %arg5[%c2, %c0_4] : memref<8x128xf32, #tpu.memory_space<vmem>>, vector<1x128xf32>
    %c0_5 = arith.constant 0 : index
    %c0_6 = arith.constant 0 : index
    %4 = vector.load %arg2[%c0_5, %c0_6] : memref<32x128xf32, #tpu.memory_space<vmem>>, vector<32x128xf32>
    %cst = arith.constant dense<0.000000e+00> : vector<8x128xf32>
    %5 = tpu.matmul %0, %4, %cst {dimension_numbers = #tpu.dot_dimension_numbers<[1], [0], [0], [1], [0, 0, 1, 1], [], []>} : vector<8x32xf32>, vector<32x128xf32>, vector<8x128xf32> -> vector<8x128xf32>
    %6 = vector.broadcast %1 : vector<1x128xf32> to vector<8x128xf32>
    %7 = arith.addf %5, %6 : vector<8x128xf32>
    %8 = math.tanh %7 : vector<8x128xf32>
    %c0_7 = arith.constant 0 : index
    %c0_8 = arith.constant 0 : index
    %9 = vector.load %arg3[%c0_7, %c0_8] : memref<128x128xf32, #tpu.memory_space<vmem>>, vector<128x128xf32>
    %cst_9 = arith.constant dense<0.000000e+00> : vector<8x128xf32>
    %10 = tpu.matmul %8, %9, %cst_9 {dimension_numbers = #tpu.dot_dimension_numbers<[1], [0], [0], [1], [0, 0, 1, 1], [], []>} : vector<8x128xf32>, vector<128x128xf32>, vector<8x128xf32> -> vector<8x128xf32>
    %11 = vector.broadcast %2 : vector<1x128xf32> to vector<8x128xf32>
    %12 = arith.addf %10, %11 : vector<8x128xf32>
    %13 = math.tanh %12 : vector<8x128xf32>
    %c0_10 = arith.constant 0 : index
    %c0_11 = arith.constant 0 : index
    %14 = vector.load %arg4[%c0_10, %c0_11] : memref<128x128xf32, #tpu.memory_space<vmem>>, vector<128x128xf32>
    %cst_12 = arith.constant dense<0.000000e+00> : vector<8x128xf32>
    %15 = tpu.matmul %13, %14, %cst_12 {dimension_numbers = #tpu.dot_dimension_numbers<[1], [0], [0], [1], [0, 0, 1, 1], [], []>} : vector<8x128xf32>, vector<128x128xf32>, vector<8x128xf32> -> vector<8x128xf32>
    %16 = vector.broadcast %3 : vector<1x128xf32> to vector<8x128xf32>
    %17 = arith.addf %15, %16 : vector<8x128xf32>
    %18 = vector.extract_strided_slice %17 {offsets = [0, 0], sizes = [8, 8], strides = [1, 1]} : vector<8x128xf32> to vector<8x8xf32>
    %19 = vector.extract_strided_slice %17 {offsets = [0, 8], sizes = [8, 1], strides = [1, 1]} : vector<8x128xf32> to vector<8x1xf32>
    %cst_13 = arith.constant dense<0xFF800000> : vector<8xf32>
    %20 = vector.multi_reduction <maximumf>, %18, %cst_13 [1] : vector<8x8xf32> to vector<8xf32>
    %21 = vector.shape_cast %20 : vector<8xf32> to vector<8x1xf32>
    %22 = vector.broadcast %21 : vector<8x1xf32> to vector<8x8xf32>
    %23 = arith.subf %18, %22 : vector<8x8xf32>
    %24 = math.exp %23 : vector<8x8xf32>
    %cst_14 = arith.constant dense<0.000000e+00> : vector<8xf32>
    %25 = vector.multi_reduction <add>, %24, %cst_14 [1] : vector<8x8xf32> to vector<8xf32>
    %26 = vector.shape_cast %25 : vector<8xf32> to vector<8x1xf32>
    %27 = math.log %26 : vector<8x1xf32>
    %28 = tpu.reciprocal %26 : vector<8x1xf32> -> vector<8x1xf32>
    %29 = vector.broadcast %27 : vector<8x1xf32> to vector<8x8xf32>
    %30 = arith.subf %23, %29 : vector<8x8xf32>
    %31 = arith.mulf %24, %23 : vector<8x8xf32>
    %cst_15 = arith.constant dense<0.000000e+00> : vector<8xf32>
    %32 = vector.multi_reduction <add>, %31, %cst_15 [1] : vector<8x8xf32> to vector<8xf32>
    %33 = vector.shape_cast %32 : vector<8xf32> to vector<8x1xf32>
    %34 = arith.mulf %33, %28 : vector<8x1xf32>
    %35 = arith.subf %27, %34 : vector<8x1xf32>
    %cst_16 = arith.constant 0.000000e+00 : f32
    %36 = vector.broadcast %cst_16 : f32 to vector<8x6xf32>
    %37 = tpu.concatenate %30, %19, %35, %36 in 1 : vector<8x8xf32>, vector<8x1xf32>, vector<8x1xf32>, vector<8x6xf32> -> vector<8x16xf32>
    %c0_17 = arith.constant 0 : index
    %c0_18 = arith.constant 0 : index
    %38 = vector.load %arg6[%c0_17, %c0_18] : memref<8x16xf32, #tpu.memory_space<vmem>>, vector<8x16xf32>
    tpu.vector_store %arg6[%c0_17, %c0_18], %37 {strides = array<i32>} : memref<8x16xf32, #tpu.memory_space<vmem>>, vector<8x16xf32>,
    return
  }
  func.func @transform_0(%arg0: i32) -> (i32, i32) {
    %c0_i32 = arith.constant 0 : i32
    %c0_i32_0 = arith.constant 0 : i32
    return %arg0, %c0_i32 : i32, i32
  }
  func.func @transform_1(%arg0: i32) -> (i32, i32) {
    %c0_i32 = arith.constant 0 : i32
    %c0_i32_0 = arith.constant 0 : i32
    %c0_i32_1 = arith.constant 0 : i32
    return %c0_i32, %c0_i32_0 : i32, i32
  }
  func.func @transform_2(%arg0: i32) -> (i32, i32) {
    %c0_i32 = arith.constant 0 : i32
    %c0_i32_0 = arith.constant 0 : i32
    %c0_i32_1 = arith.constant 0 : i32
    return %c0_i32, %c0_i32_0 : i32, i32
  }
  func.func @transform_3(%arg0: i32) -> (i32, i32) {
    %c0_i32 = arith.constant 0 : i32
    %c0_i32_0 = arith.constant 0 : i32
    %c0_i32_1 = arith.constant 0 : i32
    return %c0_i32, %c0_i32_0 : i32, i32
  }
  func.func @transform_4(%arg0: i32) -> (i32, i32) {
    %c0_i32 = arith.constant 0 : i32
    %c0_i32_0 = arith.constant 0 : i32
    %c0_i32_1 = arith.constant 0 : i32
    return %c0_i32, %c0_i32_0 : i32, i32
  }
  func.func @transform_5(%arg0: i32) -> (i32, i32) {
    %c0_i32 = arith.constant 0 : i32
    %c0_i32_0 = arith.constant 0 : i32
    return %arg0, %c0_i32 : i32, i32
  }
}

</mosaic_0001>

<llo_original>
// kernel: tpu_custom_call.1
$region0: #{tpu_custom_call.1}
  #allocation0 [shape = 'u32[]', space=smem, size = 0x4, offset = 0x4, fixed_abs, tag = 'smem constant byte address 0x4 - core index']
  #allocation1 [shape = 'u32[144,128]{1,0:T(1,128)}', space=vmem, size = 0x12000, scoped, tag = 'internal scratch']
  %s0 = inlined_call_operand.hbm [shape: f32[8,32], index: 0, kind: input, shape index: {}]
  %s1 = inlined_call_operand.hbm [shape: f32[32,128], index: 1, kind: input, shape index: {}]
  %s2 = inlined_call_operand.hbm [shape: f32[128,128], index: 2, kind: input, shape index: {}]
  %s3 = inlined_call_operand.hbm [shape: f32[128,128], index: 3, kind: input, shape index: {}]
  %s4 = inlined_call_operand.vmem [shape: f32[8,128], index: 4, kind: input, shape index: {}]
  %s5 = inlined_call_operand.hbm [shape: f32[8,16], index: 5, kind: output, shape index: {}]
  %s6 = sld [smem:[#allocation0]]
  $region46: #{tpu_custom_call.1} parent=0
    _
  %s8 = ssub.s32 1, %s6
  %s9 = scalar_select 0, %s8, %s6
  $region1: #{tpu_custom_call.1} parent=0
    #allocation2 [shape = 'u8[4096]{0}', space=vmem, size = 0x1000, scoped, tag = 'input window, operand 0, single buffered']
    #allocation3 [shape = 's32[1]{0}', space=sflag, size = 0x4, scoped, tag = 'scoped memory for tpu_custom_call.1']
    #allocation4 [shape = 's32[1]{0}', space=sflag, size = 0x4, scoped, tag = 'scoped memory for tpu_custom_call.1']
    #allocation5 [shape = 'u8[16384]{0}', space=vmem, size = 0x4000, scoped, tag = 'input window, operand 1, single buffered']
    #allocation6 [shape = 's32[1]{0}', space=sflag, size = 0x4, scoped, tag = 'scoped memory for tpu_custom_call.1']
    #allocation7 [shape = 'u8[65536]{0}', space=vmem, size = 0x10000, scoped, tag = 'input window, operand 2, single buffered']
    #allocation8 [shape = 'u8[65536]{0}', space=vmem, size = 0x10000, scoped, tag = 'input window, operand 3, single buffered']
    #allocation9 [shape = 's32[1]{0}', space=sflag, size = 0x4, scoped, tag = 'scoped memory for tpu_custom_call.1']
    #allocation10 [shape = 'u8[4096]{0}', space=vmem, size = 0x1000, scoped, tag = 'output window, operand 0, single buffered']
    %10 = vsyncpa [#allocation3], 0
    %11 = vsyncpa [#allocation6], 0
    %12 = vsyncpa [#allocation9], 0
    %13 = vsyncpa [#allocation4], 0
    // Predicated region
    $region2: #{tpu_custom_call.1} parent=1 // pred_check
      _
    $region3: #{tpu_custom_call.1} parent=1 // pred_check_branch
      %15 = sbr.rel (0) target = $region5
    $region4: #{tpu_custom_call.1} parent=1 // pred_region
      %s17 = ssub.s32 128, 128
      %18 = vsyncadd [#allocation3], %s17
      %s20 = sshll.u32 [#allocation2], 4
      %s21 = int_to_ptr.vmem [resolvable:$true] %s20
      %23 = dma.hbm_to_vmem [thread:$0]  %s0, 128, %s21, [#allocation3]
    $region5: #{tpu_custom_call.1} parent=1 // pred_fallthru
      _
    // Predicated region
    $region6: #{tpu_custom_call.1} parent=1 // pred_check
      _
    $region7: #{tpu_custom_call.1} parent=1 // pred_check_branch
      %25 = sbr.rel (0) target = $region9
    $region8: #{tpu_custom_call.1} parent=1 // pred_region
      %s27 = ssub.s32 512, 512
      %28 = vsyncadd [#allocation6], %s27
      %s29 = sshll.u32 [#allocation5], 4
      %s30 = int_to_ptr.vmem [resolvable:$true] %s29
      %35 = dma.hbm_to_vmem [thread:$0]  %s1, 512, %s30, [#allocation6], 128, 128, 8
    $region9: #{tpu_custom_call.1} parent=1 // pred_fallthru
      _
    // Predicated region
    $region10: #{tpu_custom_call.1} parent=1 // pred_check
      _
    $region11: #{tpu_custom_call.1} parent=1 // pred_check_branch
      %37 = sbr.rel (0) target = $region13
    $region12: #{tpu_custom_call.1} parent=1 // pred_region
      %s39 = ssub.s32 2048, 2048
      %40 = vsyncadd [#allocation6], %s39
      %s41 = sshll.u32 [#allocation7], 4
      %s42 = int_to_ptr.vmem [resolvable:$true] %s41
      %47 = dma.hbm_to_vmem [thread:$0]  %s2, 2048, %s42, [#allocation6], 128, 128, 8
    $region13: #{tpu_custom_call.1} parent=1 // pred_fallthru
      _
    // Predicated region
    $region14: #{tpu_custom_call.1} parent=1 // pred_check
      _
    $region15: #{tpu_custom_call.1} parent=1 // pred_check_branch
      %49 = sbr.rel (0) target = $region17
    $region16: #{tpu_custom_call.1} parent=1 // pred_region
      %s51 = ssub.s32 2048, 2048
      %52 = vsyncadd [#allocation9], %s51
      %s53 = sshll.u32 [#allocation8], 4
      %s54 = int_to_ptr.vmem [resolvable:$true] %s53
      %59 = dma.hbm_to_vmem [thread:$0]  %s3, 2048, %s54, [#allocation9], 128, 128, 8
    $region17: #{tpu_custom_call.1} parent=1 // pred_fallthru
      _
    // Predicated region
    $region18: #{tpu_custom_call.1} parent=1 // pred_check
      _
    $region19: #{tpu_custom_call.1} parent=1 // pred_check_branch
      %61 = sbr.rel (0) target = $region21
    $region20: #{tpu_custom_call.1} parent=1 // pred_region
      _
    $region21: #{tpu_custom_call.1} parent=1 // pred_fallthru
      _
    // Predicated region
    $region22: #{tpu_custom_call.1} parent=1 // pred_check
      _
    $region23: #{tpu_custom_call.1} parent=1 // pred_check_branch
      %63 = sbr.rel (0) target = $region25
    $region24: #{tpu_custom_call.1} parent=1 // pred_region
      %64 = dma.done [#allocation3], 128
    $region25: #{tpu_custom_call.1} parent=1 // pred_fallthru
      _
    // Predicated region
    $region26: #{tpu_custom_call.1} parent=1 // pred_check
      _
    $region27: #{tpu_custom_call.1} parent=1 // pred_check_branch
      %66 = sbr.rel (0) target = $region29
    $region28: #{tpu_custom_call.1} parent=1 // pred_region
      %67 = dma.done [#allocation6], 512
    $region29: #{tpu_custom_call.1} parent=1 // pred_fallthru
      _
    // Predicated region
    $region30: #{tpu_custom_call.1} parent=1 // pred_check
      _
    $region31: #{tpu_custom_call.1} parent=1 // pred_check_branch
      %69 = sbr.rel (0) target = $region33
    $region32: #{tpu_custom_call.1} parent=1 // pred_region
      %70 = dma.done [#allocation6], 2048
    $region33: #{tpu_custom_call.1} parent=1 // pred_fallthru
      _
    // Predicated region
    $region34: #{tpu_custom_call.1} parent=1 // pred_check
      _
    $region35: #{tpu_custom_call.1} parent=1 // pred_check_branch
      %72 = sbr.rel (0) target = $region37
    $region36: #{tpu_custom_call.1} parent=1 // pred_region
      %73 = dma.done [#allocation9], 2048
    $region37: #{tpu_custom_call.1} parent=1 // pred_fallthru
      _
    %v74 = vld [vmem:[#allocation2] sm:$0xff]
    %v75 = vld [vmem:[%s4] sm:$0x1]
    %v76 = vld [vmem:[%s4 + $0x1] sm:$0x1]
    %v77 = vld [vmem:[%s4 + $0x2] sm:$0x1]
    %v78 = vld [vmem:[#allocation5] sm:$0xff]
    %v79 = vld [vmem:[#allocation5 + $0x8] sm:$0xff]
    %v80 = vld [vmem:[#allocation5 + $0x10] sm:$0xff]
    %v81 = vld [vmem:[#allocation5 + $0x18] sm:$0xff]
    %v82 = vlaneseq
    %v83 = vshrl.u32 %v82, 7
    %v84 = vsub.s32 0, %v83
    %v85 = vrot.slane %v75, %v84
    %vm86 = vcmask 261120
    %v88 = vsel %vm86, %v74, 0
    %90 = vmatprep.subr.mxu0 0.0
    %91 = vmatpush1.msra.mxu0 %v78
    %92 = vmatprep.subr.mxu0 0.0
    %93 = vmatpush1.msra.mxu0 %v79
    %94 = vmatprep.subr.mxu0 0.0
    %95 = vmatpush1.msra.mxu0 %v80
    %96 = vmatprep.subr.mxu0 0.0
    %97 = vmatpush1.msra.mxu0 %v81
    %98 = vmatprep.subr.mxu0 0.0
    %99 = vmatpush1.msra.mxu0 0.0
    %100 = vmatprep.subr.mxu0 0.0
    %101 = vmatpush1.msra.mxu0 0.0
    %102 = vmatprep.subr.mxu0 0.0
    %103 = vmatpush1.msra.mxu0 0.0
    %104 = vmatprep.subr.mxu0 0.0
    %105 = vmatpush1.msra.mxu0 0.0
    %106 = vmatprep.subr.mxu0 0.0
    %107 = vmatpush1.msra.mxu0 0.0
    %108 = vmatprep.subr.mxu0 0.0
    %109 = vmatpush1.msra.mxu0 0.0
    %110 = vmatprep.subr.mxu0 0.0
    %111 = vmatpush1.msra.mxu0 0.0
    %112 = vmatprep.subr.mxu0 0.0
    %113 = vmatpush1.msra.mxu0 0.0
    %114 = vmatprep.subr.mxu0 0.0
    %115 = vmatpush1.msra.mxu0 0.0
    %116 = vmatprep.subr.mxu0 0.0
    %117 = vmatpush1.msra.mxu0 0.0
    %118 = vmatprep.subr.mxu0 0.0
    %119 = vmatpush1.msra.mxu0 0.0
    %120 = vmatprep.subr.mxu0 0.0
    %121 = vmatpush1.msra.mxu0 0.0
    %122 = vmatprep.subr.mxu0 0.0
    %123 = vmatpush1.msra.mxu0 0.0
    %124 = vmatprep.subr.mxu0 0.0
    %125 = vmatpush1.msra.mxu0 0.0
    %126 = vmatprep.subr.mxu0 0.0
    %127 = vmatpush1.msra.mxu0 0.0
    %128 = vmatprep.subr.mxu0 0.0
    %129 = vmatpush1.msra.mxu0 0.0
    %130 = vmatprep.subr.mxu0 0.0
    %131 = vmatpush1.msra.mxu0 0.0
    %132 = vmatprep.subr.mxu0 0.0
    %133 = vmatpush1.msra.mxu0 0.0
    %134 = vmatprep.subr.mxu0 0.0
    %135 = vmatpush1.msra.mxu0 0.0
    %136 = vmatprep.subr.mxu0 0.0
    %137 = vmatpush1.msra.mxu0 0.0
    %138 = vmatprep.subr.mxu0 0.0
    %139 = vmatpush1.msra.mxu0 0.0
    %140 = vmatprep.subr.mxu0 0.0
    %141 = vmatpush1.msra.mxu0 0.0
    %142 = vmatprep.subr.mxu0 0.0
    %143 = vmatpush1.msra.mxu0 0.0
    %144 = vmatprep.subr.mxu0 0.0
    %145 = vmatpush1.msra.mxu0 0.0
    %146 = vmatprep.subr.mxu0 0.0
    %147 = vmatpush1.msra.mxu0 0.0
    %148 = vmatprep.subr.mxu0 0.0
    %149 = vmatpush1.msra.mxu0 0.0
    %150 = vmatprep.subr.mxu0 0.0
    %151 = vmatpush1.msra.mxu0 0.0
    %152 = vmatprep.subr.mxu0 0.0
    %153 = vmatpush1.msra.mxu0 0.0
    %154 = vmatprep.mubr.f32.mxu0 0.0
    %155 = vmatmul.mubr.f32.gmra.mrb[0].mxu0 %v88
    %v156 = vpop.f32.mrb[0].mxu0
    %v157 = vadd.f32 %v85, %v156
    %v158 = vpop.f32.mrb[0].mxu0
    %159 = vdwg.mxu0
    %v160 = vtanh.pop %v157
    %v161 = vld [vmem:[#allocation7] sm:$0xff]
    %v162 = vld [vmem:[#allocation7 + $0x8] sm:$0xff]
    %v163 = vld [vmem:[#allocation7 + $0x10] sm:$0xff]
    %v164 = vld [vmem:[#allocation7 + $0x18] sm:$0xff]
    %v165 = vld [vmem:[#allocation7 + $0x20] sm:$0xff]
    %v166 = vld [vmem:[#allocation7 + $0x28] sm:$0xff]
    %v167 = vld [vmem:[#allocation7 + $0x30] sm:$0xff]
    %v168 = vld [vmem:[#allocation7 + $0x38] sm:$0xff]
    %v169 = vld [vmem:[#allocation7 + $0x40] sm:$0xff]
    %v170 = vld [vmem:[#allocation7 + $0x48] sm:$0xff]
    %v171 = vld [vmem:[#allocation7 + $0x50] sm:$0xff]
    %v172 = vld [vmem:[#allocation7 + $0x58] sm:$0xff]
    %v173 = vld [vmem:[#allocation7 + $0x60] sm:$0xff]
    %v174 = vld [vmem:[#allocation7 + $0x68] sm:$0xff]
    %v175 = vld [vmem:[#allocation7 + $0x70] sm:$0xff]
    %v176 = vld [vmem:[#allocation7 + $0x78] sm:$0xff]
    %v177 = vlaneseq
    %v178 = vshrl.u32 %v177, 7
    %v179 = vsub.s32 0, %v178
    %v180 = vrot.slane %v76, %v179
    %181 = vmatprep.subr.mxu0 0.0
    %182 = vmatpush1.msra.mxu0 %v161
    %183 = vmatprep.subr.mxu0 0.0
    %184 = vmatpush1.msra.mxu0 %v162
    %185 = vmatprep.subr.mxu0 0.0
    %186 = vmatpush1.msra.mxu0 %v163
    %187 = vmatprep.subr.mxu0 0.0
    %188 = vmatpush1.msra.mxu0 %v164
    %189 = vmatprep.subr.mxu0 0.0
    %190 = vmatpush1.msra.mxu0 %v165
    %191 = vmatprep.subr.mxu0 0.0
    %192 = vmatpush1.msra.mxu0 %v166
    %193 = vmatprep.subr.mxu0 0.0
    %194 = vmatpush1.msra.mxu0 %v167
    %195 = vmatprep.subr.mxu0 0.0
    %196 = vmatpush1.msra.mxu0 %v168
    %197 = vmatprep.subr.mxu0 0.0
    %198 = vmatpush1.msra.mxu0 %v169
    %199 = vmatprep.subr.mxu0 0.0
    %200 = vmatpush1.msra.mxu0 %v170
    %201 = vmatprep.subr.mxu0 0.0
    %202 = vmatpush1.msra.mxu0 %v171
    %203 = vmatprep.subr.mxu0 0.0
    %204 = vmatpush1.msra.mxu0 %v172
    %205 = vmatprep.subr.mxu0 0.0
    %206 = vmatpush1.msra.mxu0 %v173
    %207 = vmatprep.subr.mxu0 0.0
    %208 = vmatpush1.msra.mxu0 %v174
    %209 = vmatprep.subr.mxu0 0.0
    %210 = vmatpush1.msra.mxu0 %v175
    %211 = vmatprep.subr.mxu0 0.0
    %212 = vmatpush1.msra.mxu0 %v176
    %213 = vmatprep.subr.mxu0 0.0
    %214 = vmatpush1.msra.mxu0 0.0
    %215 = vmatprep.subr.mxu0 0.0
    %216 = vmatpush1.msra.mxu0 0.0
    %217 = vmatprep.subr.mxu0 0.0
    %218 = vmatpush1.msra.mxu0 0.0
    %219 = vmatprep.subr.mxu0 0.0
    %220 = vmatpush1.msra.mxu0 0.0
    %221 = vmatprep.subr.mxu0 0.0
    %222 = vmatpush1.msra.mxu0 0.0
    %223 = vmatprep.subr.mxu0 0.0
    %224 = vmatpush1.msra.mxu0 0.0
    %225 = vmatprep.subr.mxu0 0.0
    %226 = vmatpush1.msra.mxu0 0.0
    %227 = vmatprep.subr.mxu0 0.0
    %228 = vmatpush1.msra.mxu0 0.0
    %229 = vmatprep.subr.mxu0 0.0
    %230 = vmatpush1.msra.mxu0 0.0
    %231 = vmatprep.subr.mxu0 0.0
    %232 = vmatpush1.msra.mxu0 0.0
    %233 = vmatprep.subr.mxu0 0.0
    %234 = vmatpush1.msra.mxu0 0.0
    %235 = vmatprep.subr.mxu0 0.0
    %236 = vmatpush1.msra.mxu0 0.0
    %237 = vmatprep.subr.mxu0 0.0
    %238 = vmatpush1.msra.mxu0 0.0
    %239 = vmatprep.subr.mxu0 0.0
    %240 = vmatpush1.msra.mxu0 0.0
    %241 = vmatprep.subr.mxu0 0.0
    %242 = vmatpush1.msra.mxu0 0.0
    %243 = vmatprep.subr.mxu0 0.0
    %244 = vmatpush1.msra.mxu0 0.0
    %245 = vmatprep.mubr.f32.mxu0 0.0
    %246 = vmatmul.mubr.f32.gmra.mrb[0].mxu0 %v160
    %v247 = vpop.f32.mrb[0].mxu0
    %v248 = vadd.f32 %v180, %v247
    %v249 = vpop.f32.mrb[0].mxu0
    %250 = vdwg.mxu0
    %v251 = vtanh.pop %v248
    %v252 = vld [vmem:[#allocation8] sm:$0xff]
    %v253 = vld [vmem:[#allocation8 + $0x8] sm:$0xff]
    %v254 = vld [vmem:[#allocation8 + $0x10] sm:$0xff]
    %v255 = vld [vmem:[#allocation8 + $0x18] sm:$0xff]
    %v256 = vld [vmem:[#allocation8 + $0x20] sm:$0xff]
    %v257 = vld [vmem:[#allocation8 + $0x28] sm:$0xff]
    %v258 = vld [vmem:[#allocation8 + $0x30] sm:$0xff]
    %v259 = vld [vmem:[#allocation8 + $0x38] sm:$0xff]
    %v260 = vld [vmem:[#allocation8 + $0x40] sm:$0xff]
    %v261 = vld [vmem:[#allocation8 + $0x48] sm:$0xff]
    %v262 = vld [vmem:[#allocation8 + $0x50] sm:$0xff]
    %v263 = vld [vmem:[#allocation8 + $0x58] sm:$0xff]
    %v264 = vld [vmem:[#allocation8 + $0x60] sm:$0xff]
    %v265 = vld [vmem:[#allocation8 + $0x68] sm:$0xff]
    %v266 = vld [vmem:[#allocation8 + $0x70] sm:$0xff]
    %v267 = vld [vmem:[#allocation8 + $0x78] sm:$0xff]
    %v268 = vlaneseq
    %v269 = vshrl.u32 %v268, 7
    %v270 = vsub.s32 0, %v269
    %v271 = vrot.slane %v77, %v270
    %272 = vmatprep.subr.mxu0 0.0
    %273 = vmatpush1.msra.mxu0 %v252
    %274 = vmatprep.subr.mxu0 0.0
    %275 = vmatpush1.msra.mxu0 %v253
    %276 = vmatprep.subr.mxu0 0.0
    %277 = vmatpush1.msra.mxu0 %v254
    %278 = vmatprep.subr.mxu0 0.0
    %279 = vmatpush1.msra.mxu0 %v255
    %280 = vmatprep.subr.mxu0 0.0
    %281 = vmatpush1.msra.mxu0 %v256
    %282 = vmatprep.subr.mxu0 0.0
    %283 = vmatpush1.msra.mxu0 %v257
    %284 = vmatprep.subr.mxu0 0.0
    %285 = vmatpush1.msra.mxu0 %v258
    %286 = vmatprep.subr.mxu0 0.0
    %287 = vmatpush1.msra.mxu0 %v259
    %288 = vmatprep.subr.mxu0 0.0
    %289 = vmatpush1.msra.mxu0 %v260
    %290 = vmatprep.subr.mxu0 0.0
    %291 = vmatpush1.msra.mxu0 %v261
    %292 = vmatprep.subr.mxu0 0.0
    %293 = vmatpush1.msra.mxu0 %v262
    %294 = vmatprep.subr.mxu0 0.0
    %295 = vmatpush1.msra.mxu0 %v263
    %296 = vmatprep.subr.mxu0 0.0
    %297 = vmatpush1.msra.mxu0 %v264
    %298 = vmatprep.subr.mxu0 0.0
    %299 = vmatpush1.msra.mxu0 %v265
    %300 = vmatprep.subr.mxu0 0.0
    %301 = vmatpush1.msra.mxu0 %v266
    %302 = vmatprep.subr.mxu0 0.0
    %303 = vmatpush1.msra.mxu0 %v267
    %304 = vmatprep.subr.mxu0 0.0
    %305 = vmatpush1.msra.mxu0 0.0
    %306 = vmatprep.subr.mxu0 0.0
    %307 = vmatpush1.msra.mxu0 0.0
    %308 = vmatprep.subr.mxu0 0.0
    %309 = vmatpush1.msra.mxu0 0.0
    %310 = vmatprep.subr.mxu0 0.0
    %311 = vmatpush1.msra.mxu0 0.0
    %312 = vmatprep.subr.mxu0 0.0
    %313 = vmatpush1.msra.mxu0 0.0
    %314 = vmatprep.subr.mxu0 0.0
    %315 = vmatpush1.msra.mxu0 0.0
    %316 = vmatprep.subr.mxu0 0.0
    %317 = vmatpush1.msra.mxu0 0.0
    %318 = vmatprep.subr.mxu0 0.0
    %319 = vmatpush1.msra.mxu0 0.0
    %320 = vmatprep.subr.mxu0 0.0
    %321 = vmatpush1.msra.mxu0 0.0
    %322 = vmatprep.subr.mxu0 0.0
    %323 = vmatpush1.msra.mxu0 0.0
    %324 = vmatprep.subr.mxu0 0.0
    %325 = vmatpush1.msra.mxu0 0.0
    %326 = vmatprep.subr.mxu0 0.0
    %327 = vmatpush1.msra.mxu0 0.0
    %328 = vmatprep.subr.mxu0 0.0
    %329 = vmatpush1.msra.mxu0 0.0
    %330 = vmatprep.subr.mxu0 0.0
    %331 = vmatpush1.msra.mxu0 0.0
    %332 = vmatprep.subr.mxu0 0.0
    %333 = vmatpush1.msra.mxu0 0.0
    %334 = vmatprep.subr.mxu0 0.0
    %335 = vmatpush1.msra.mxu0 0.0
    %336 = vmatprep.mubr.f32.mxu0 0.0
    %337 = vmatmul.mubr.f32.gmra.mrb[0].mxu0 %v251
    %v338 = vpop.f32.mrb[0].mxu0
    %v339 = vadd.f32 %v271, %v338
    %v340 = vpop.f32.mrb[0].mxu0
    %341 = vdwg.mxu0
    %vm342 = vcmask 64512
    %v343 = vsel %vm342, %v339, -inf
    %344 = vmax.xlane.f32.xlu0 %v343
    %v345 = vpop.xlane.xlu0 %344
    %v346 = vsub.f32 %v339, %v345
    %v347 = vmul.f32 %v346, 1.442695
    %v348 = vpow.pop %v347
    %v349 = vsel %vm342, %v348, 0.0
    %350 = vadd.xlane.f32.xlu0 %v349
    %v351 = vpop.xlane.xlu0 %350
    %v352 = vlog2.pop %v351
    %v353 = vmul.f32 %v352, 0.6931472
    %v354 = vrcp.pop %v351
    %v355 = vsub.f32 %v346, %v353
    %v356 = vmul.f32 %v348, %v346
    %v357 = vsel %vm342, %v356, 0.0
    %358 = vadd.xlane.f32.xlu0 %v357
    %v359 = vpop.xlane.xlu0 %358
    %v360 = vmul.f32 %v359, %v354
    %v361 = vsub.f32 %v353, %v360
    %v362 = vsel %vm342, %v355, %v339
    %vm363 = vcmask 72704
    %v364 = vsel %vm363, %v362, %v361
    %vm365 = vcmask 80896
    %v366 = vsel %vm365, %v364, 0.0
    %vm367 = vcmask 130048
    %368 = vst.msk [vmem:[#allocation10] sm:$0xff] %vm367, %v366
    // Predicated region
    $region38: #{tpu_custom_call.1} parent=1 // pred_check
      _
    $region39: #{tpu_custom_call.1} parent=1 // pred_check_branch
      %370 = sbr.rel (0) target = $region41
    $region40: #{tpu_custom_call.1} parent=1 // pred_region
      %s372 = ssub.s32 128, 128
      %373 = vsyncadd [#allocation4], %s372
      %s375 = sshll.u32 [#allocation10], 4
      %s376 = int_to_ptr.vmem [resolvable:$true] %s375
      %378 = dma.vmem_to_hbm [thread:$0]  %s376, 128, %s5, [#allocation4]
    $region41: #{tpu_custom_call.1} parent=1 // pred_fallthru
      _
    // Predicated region
    $region42: #{tpu_custom_call.1} parent=1 // pred_check
      _
    $region43: #{tpu_custom_call.1} parent=1 // pred_check_branch
      %380 = sbr.rel (0) target = $region45
    $region44: #{tpu_custom_call.1} parent=1 // pred_region
      %381 = dma.done [#allocation4], 128
    $region45: #{tpu_custom_call.1} parent=1 // pred_fallthru
      _
    %382 = vsyncpa [#allocation3], 1
    %383 = vsyncpa [#allocation6], 1
    %384 = vsyncpa [#allocation9], 1
    %385 = vsyncpa [#allocation4], 1

</llo_original>
